<compile_context>
chip_gen: v6e
topology: v6e:2x2x1
jax: 0.10.0
libtpu: 0.0.40
codegen_flags: <defaults>
</compile_context>

<pallas_src>
import functools

import jax
import jax.numpy as jnp
from jax.experimental import pallas as pl
from jax.experimental.pallas import tpu as pltpu


# --------------------------------------------------------------------------- #
# Helpers
# --------------------------------------------------------------------------- #
def _round_up(x, m):
    return ((x + m - 1) // m) * m


def _ceil_div(a, b):
    return -(-a // b)


def _vmem_limit_bytes():
    """Generation-aware VMEM budget: ~75% of physical capacity, <=100 MiB."""
    try:
        cap = int(pltpu.get_tpu_info().vmem_capacity_bytes)
    except Exception:
        cap = 64 * 1024 * 1024  # conservative (v7x-sized) fallback
    return int(min(cap * 3 // 4, 100 * 1024 * 1024))


def _default_min_row_blocks():
    """>=2 row blocks on v7x-class chips (2 TensorCores/chip), else 1."""
    try:
        kind = jax.devices()[0].device_kind.lower()
    except Exception:
        return 1
    return 2 if ("v7" in kind or "7x" in kind) else 1


# --------------------------------------------------------------------------- #
# Kernel
# --------------------------------------------------------------------------- #
def _embed_kernel(x_ref, w1_ref, b1_ref, w2_ref, b2_ref, e_ref, h_acc):
    """One (row-block, K-block) step of the fused Siamese embedding net.

    x_ref : [tile_r, tile_k] bf16/f32   stacked (x1;x2) rows, K slice
    w1_ref: [tile_k, H]      bf16/f32
    b1_ref: [1, H]           f32
    w2_ref: [H, E]           bf16/f32
    b2_ref: [1, E]           f32
    e_ref : [tile_r, E]      f32        ReLU'd embeddings (lane-dense output)
    h_acc : [tile_r, H]      f32        VMEM scratch, layer-1 accumulator over K
    """
    k = pl.program_id(1)

    @pl.when(k == 0)
    def _():
        h_acc[...] = jnp.zeros_like(h_acc)

    # Layer-1 partial product: MXU matmul with f32 accumulation.
    h_acc[...] += jnp.dot(x_ref[...], w1_ref[...],
                          preferred_element_type=jnp.float32)

    @pl.when(k == pl.num_programs(1) - 1)
    def _():
        # Bias + ReLU in f32.
        h = jnp.maximum(h_acc[...] + b1_ref[...], 0.0)
        # Layer 2: MXU matmul, f32 accumulation; bias + final ReLU in f32
        # (the final ReLU is VerificationNet.forward_one's self._relu).
        e = jnp.dot(h.astype(w2_ref.dtype), w2_ref[...],
                    preferred_element_type=jnp.float32) + b2_ref[...]
        e_ref[...] = jnp.maximum(e, 0.0)


# --------------------------------------------------------------------------- #
# Pallas-call wrapper
# --------------------------------------------------------------------------- #
def _embed(x_p, w1_p, b1_2d, w2_p, b2_2d, *, tile_r, tile_k):
    R_pad, Din_pad = x_p.shape
    H = w1_p.shape[1]
    E = w2_p.shape[1]
    num_r = R_pad // tile_r
    num_k = Din_pad // tile_k

    # Deeper w1 pipeline only when there is actually a K pipeline to hide.
    w1_spec_kwargs = {}
    if num_k >= 3:
        w1_spec_kwargs["pipeline_mode"] = pl.Buffered(3)

    grid_spec = pltpu.PrefetchScalarGridSpec(
        num_scalar_prefetch=0,
        grid=(num_r, num_k),
        in_specs=[
            pl.BlockSpec((tile_r, tile_k), lambda r, k: (r, k)),            # x
            pl.BlockSpec((tile_k, H), lambda r, k: (k, 0), **w1_spec_kwargs),  # w1
            pl.BlockSpec((1, H), lambda r, k: (0, 0)),                      # b1 (resident)
            pl.BlockSpec((H, E), lambda r, k: (0, 0)),                      # w2 (resident)
            pl.BlockSpec((1, E), lambda r, k: (0, 0)),                      # b2 (resident)
        ],
        out_specs=pl.BlockSpec((tile_r, E), lambda r, k: (r, 0)),
        scratch_shapes=[pltpu.VMEM((tile_r, H), jnp.float32)],
    )

    itemsize = jnp.dtype(x_p.dtype).itemsize
    cost = pl.CostEstimate(
        flops=2 * R_pad * Din_pad * H + 2 * R_pad * H * E,
        transcendentals=0,
        bytes_accessed=(R_pad * Din_pad * itemsize            # x (read once)
                        + num_r * Din_pad * H * itemsize      # w1 re-streamed per row block
                        + H * E * itemsize                    # w2 (resident)
                        + (H + E) * 4                         # biases
                        + R_pad * E * 4),                     # f32 embedding slab out
    )

    return pl.pallas_call(
        _embed_kernel,
        out_shape=jax.ShapeDtypeStruct((R_pad, E), jnp.float32),
        grid_spec=grid_spec,
        compiler_params=pltpu.CompilerParams(
            dimension_semantics=("parallel", "arbitrary"),
            vmem_limit_bytes=_vmem_limit_bytes(),
        ),
        cost_estimate=cost,
    )(x_p, w1_p, b1_2d, w2_p, b2_2d)


def _row_tiling(B, max_tile_r, min_row_blocks):
    R = 2 * B
    r16 = _round_up(R, 16)                     # bf16 packs two rows per sublane
    tile_r = min(max_tile_r, r16)
    if min_row_blocks > 1 and r16 > 16:
        # Cap the row tile so the "parallel" axis has >= min_row_blocks blocks
        # (lets v7x shard it across both TensorCores).
        tile_r = min(tile_r, max(16, _round_up(_ceil_div(r16, min_row_blocks), 16)))
    R_pad = _round_up(R, tile_r)
    return R, R_pad, tile_r


def _prepare_inputs(x1, x2, R, R_pad, Din, Din_pad, op_dtype):
    """Stack the two Siamese branches into one [R_pad, Din_pad] operand.

    Cast to the matmul operand dtype BEFORE any copy; build the padded buffer
    directly in that dtype (no intermediate f32 padded copy)."""
    B = x1.shape[0]
    x1f = x1.reshape(B, -1).astype(op_dtype)
    x2f = x2.reshape(B, -1).astype(op_dtype)
    if R_pad == R and Din_pad == Din:
        return jnp.concatenate([x1f, x2f], axis=0)
    return (jnp.zeros((R_pad, Din_pad), op_dtype)
            .at[:B, :Din].set(x1f)
            .at[B:R, :Din].set(x2f))


def _prepare_weights(w1, b1, w2, b2, Din_pad, op_dtype):
    """Cast/pad weights ONCE (hoisted out of the per-call jit)."""
    Din, H = w1.shape
    E = w2.shape[1]
    w1_p = w1.astype(op_dtype)
    if Din_pad != Din:
        w1_p = jnp.zeros((Din_pad, H), op_dtype).at[:Din, :].set(w1_p)
    w2_p = w2.astype(op_dtype)
    b1_2d = b1.reshape(1, H).astype(jnp.float32)
    b2_2d = b2.reshape(1, E).astype(jnp.float32)
    return w1_p, b1_2d, w2_p, b2_2d


@functools.partial(jax.jit,
                   static_argnames=("tile_k", "max_tile_r", "min_row_blocks"))
def _verification_call(x1, x2, w1_p, b1_2d, w2_p, b2_2d, *,
                       tile_k, max_tile_r, min_row_blocks):
    B = x1.shape[0]
    Din = x1.size // B
    Din_pad = w1_p.shape[0]
    op_dtype = w1_p.dtype

    R, R_pad, tile_r = _row_tiling(B, max_tile_r, min_row_blocks)
    x_p = _prepare_inputs(x1, x2, R, R_pad, Din, Din_pad, op_dtype)

    # Lane-dense [R_pad, E] f32 embedding slab; tiny distance reduction in XLA.
    e = _embed(x_p, w1_p, b1_2d, w2_p, b2_2d, tile_r=tile_r, tile_k=tile_k)
    e1 = e[:B]
    e2 = e[B:R]
    return jnp.sum((e2 - e1) ** 2, axis=1)


def make_verification_fn(w1, b1, w2, b2, *, max_tile_k=4096, max_tile_r=512,
                         min_row_blocks=None, use_bf16=True):
    """Prepare (cast/pad) the weights once; return a jitted fn of (x1, x2)."""
    if min_row_blocks is None:
        min_row_blocks = _default_min_row_blocks()
    Din, _ = w1.shape
    op_dtype = jnp.bfloat16 if use_bf16 else jnp.float32

    # Balanced, lane-aligned K tiles; K grid collapses to 1 when Din fits.
    k128 = _round_up(Din, 128)
    num_k = max(1, _ceil_div(k128, max_tile_k))
    tile_k = _round_up(_ceil_div(k128, num_k), 128)
    Din_pad = _round_up(Din, tile_k)

    w1_p, b1_2d, w2_p, b2_2d = _prepare_weights(w1, b1, w2, b2, Din_pad, op_dtype)

    def fn(x1, x2):
        return _verification_call(x1, x2, w1_p, b1_2d, w2_p, b2_2d,
                                  tile_k=tile_k, max_tile_r=max_tile_r,
                                  min_row_blocks=min_row_blocks)

    return fn


def verification_net(x1, x2, w1, b1, w2, b2, **kwargs):
    """One-shot convenience wrapper. x1, x2: [B, C, H, W]. Returns [B] f32."""
    return make_verification_fn(w1, b1, w2, b2, **kwargs)(x1, x2)


# --------------------------------------------------------------------------- #
# Pure-JAX reference
# --------------------------------------------------------------------------- #
def _reference(x1, x2, w1, b1, w2, b2, *, matmul_dtype=jnp.float32):
    """matmul_dtype=bfloat16 mirrors the kernel's default numerics."""
    def fwd_one(x):
        xf = x.reshape(x.shape[0], -1)
        h = jnp.dot(xf.astype(matmul_dtype), w1.astype(matmul_dtype),
                    preferred_element_type=jnp.float32) + b1
        h = jnp.maximum(h, 0.0)
        e = jnp.dot(h.astype(matmul_dtype), w2.astype(matmul_dtype),
                    preferred_element_type=jnp.float32) + b2
        return jnp.maximum(e, 0.0)

    e1 = fwd_one(x1)
    e2 = fwd_one(x2)
    return jnp.sum((e2 - e1) ** 2, axis=1)


# --------------------------------------------------------------------------- #
# Demo / self-test
# --------------------------------------------------------------------------- #
if __name__ == "__main__":
    # Small shapes: batch=2, channels=4, spatial=16 -> Din = 4*16*16 = 1024.
    B, C, HH, WW = 2, 4, 16, 16
    Din = C * HH * WW
    HID = 256   # 256-wide layers fill the v6e/v7x 256x256 MXU
    EMB = 256

    key = jax.random.PRNGKey(0)
    k1, k2, k3, k4, k5, k6 = jax.random.split(key, 6)

    x1 = jax.random.normal(k1, (B, C, HH, WW), dtype=jnp.float32)
    x2 = jax.random.normal(k2, (B, C, HH, WW), dtype=jnp.float32)

    # Deterministic synthetic embedding-net parameters (fan-in scaled).
    w1 = jax.random.normal(k3, (Din, HID), dtype=jnp.float32) * (1.0 / jnp.sqrt(Din))
    b1 = jax.random.normal(k4, (HID,), dtype=jnp.float32) * 0.01
    w2 = jax.random.normal(k5, (HID, EMB), dtype=jnp.float32) * (1.0 / jnp.sqrt(HID))
    b2 = jax.random.normal(k6, (EMB,), dtype=jnp.float32) * 0.01

    # Default bf16-operand path (weights prepared once, outside the per-call jit).
    fn_bf16 = make_verification_fn(w1, b1, w2, b2)
    dist = jax.block_until_ready(fn_bf16(x1, x2))
    assert dist.shape == (B,)

    # Numerics-matched reference (same bf16 matmul operands, f32 accumulation).
    ref_bf16 = _reference(x1, x2, w1, b1, w2, b2, matmul_dtype=jnp.bfloat16)
    assert jnp.allclose(dist, ref_bf16, rtol=2e-3, atol=1e-3), (dist, ref_bf16)

    # Sanity check against the full-f32 module semantics (loose tolerance for
    # the bf16 matmul operands).
    ref_f32 = _reference(x1, x2, w1, b1, w2, b2, matmul_dtype=jnp.float32)
    assert jnp.allclose(dist, ref_f32, rtol=5e-2, atol=5e-2), (dist, ref_f32)

    # Optional f32-operand mode (exact-module numerics for threshold-sensitive use).
    fn_f32 = make_verification_fn(w1, b1, w2, b2, use_bf16=False)
    dist_f32 = jax.block_until_ready(fn_f32(x1, x2))
    assert jnp.allclose(dist_f32, ref_f32, rtol=1e-2, atol=1e-3), (dist_f32, ref_f32)

    print("KERNEL_OK")
</pallas_src>

<mosaic_0001>
module attributes {stable_mosaic.version = 11 : i64} {
  func.func @_embed_kernel(%arg0: i32, %arg1: i32, %arg2: memref<16x1024xbf16, #tpu.memory_space<vmem>>, %arg3: memref<1024x256xbf16, #tpu.memory_space<vmem>>, %arg4: memref<1x256xf32, #tpu.memory_space<vmem>>, %arg5: memref<256x256xbf16, #tpu.memory_space<vmem>>, %arg6: memref<1x256xf32, #tpu.memory_space<vmem>>, %arg7: memref<16x256xf32, #tpu.memory_space<vmem>>, %arg8: memref<16x256xf32, #tpu.memory_space<vmem>>) attributes {dimension_semantics = [#tpu.dimension_semantics<parallel>, #tpu.dimension_semantics<arbitrary>], iteration_bounds = array<i64: 1, 1>, scalar_prefetch = 0 : i64, scratch_operands = 1 : i64, tpu.core_type = #tpu.core_type<tc>, window_params = [{transform_indices = @transform_0, window_bounds = array<i64: 16, 1024>}, {transform_indices = @transform_1, window_bounds = array<i64: 1024, 256>}, {pipeline_mode = #tpu.pipeline_mode<synchronous>, transform_indices = @transform_2, window_bounds = array<i64: 1, 256>}, {pipeline_mode = #tpu.pipeline_mode<synchronous>, transform_indices = @transform_3, window_bounds = array<i64: 256, 256>}, {pipeline_mode = #tpu.pipeline_mode<synchronous>, transform_indices = @transform_4, window_bounds = array<i64: 1, 256>}, {transform_indices = @transform_5, window_bounds = array<i64: 16, 256>}]} {
    %c0_i32 = arith.constant 0 : i32
    %0 = arith.cmpi eq, %arg1, %c0_i32 : i32
    %1 = arith.extui %0 : i1 to i32
    %c0_i32_0 = arith.constant 0 : i32
    %2 = arith.cmpi ne, %1, %c0_i32_0 : i32
    scf.if %2 {
      %cst_10 = arith.constant 0.000000e+00 : f32
      %12 = vector.broadcast %cst_10 : f32 to vector<16x256xf32>
      %c0_11 = arith.constant 0 : index
      %c0_12 = arith.constant 0 : index
      %13 = vector.load %arg8[%c0_11, %c0_12] : memref<16x256xf32, #tpu.memory_space<vmem>>, vector<16x256xf32>
      tpu.vector_store %arg8[%c0_11, %c0_12], %12 {strides = array<i32>} : memref<16x256xf32, #tpu.memory_space<vmem>>, vector<16x256xf32>,
    } else {
    }
    %c0 = arith.constant 0 : index
    %c0_1 = arith.constant 0 : index
    %3 = vector.load %arg8[%c0, %c0_1] : memref<16x256xf32, #tpu.memory_space<vmem>>, vector<16x256xf32>
    %c0_2 = arith.constant 0 : index
    %c0_3 = arith.constant 0 : index
    %4 = vector.load %arg2[%c0_2, %c0_3] : memref<16x1024xbf16, #tpu.memory_space<vmem>>, vector<16x1024xbf16>
    %c0_4 = arith.constant 0 : index
    %c0_5 = arith.constant 0 : index
    %5 = vector.load %arg3[%c0_4, %c0_5] : memref<1024x256xbf16, #tpu.memory_space<vmem>>, vector<1024x256xbf16>
    %cst = arith.constant dense<0.000000e+00> : vector<16x256xf32>
    %6 = tpu.matmul %4, %5, %cst {dimension_numbers = #tpu.dot_dimension_numbers<[1], [0], [0], [1], [0, 0, 1, 1], [], []>} : vector<16x1024xbf16>, vector<1024x256xbf16>, vector<16x256xf32> -> vector<16x256xf32>
    %7 = arith.addf %3, %6 : vector<16x256xf32>
    %c0_6 = arith.constant 0 : index
    %c0_7 = arith.constant 0 : index
    %8 = vector.load %arg8[%c0_6, %c0_7] : memref<16x256xf32, #tpu.memory_space<vmem>>, vector<16x256xf32>
    tpu.vector_store %arg8[%c0_6, %c0_7], %7 {strides = array<i32>} : memref<16x256xf32, #tpu.memory_space<vmem>>, vector<16x256xf32>,
    %c0_i32_8 = arith.constant 0 : i32
    %9 = arith.cmpi eq, %arg1, %c0_i32_8 : i32
    %10 = arith.extui %9 : i1 to i32
    %c0_i32_9 = arith.constant 0 : i32
    %11 = arith.cmpi ne, %10, %c0_i32_9 : i32
    scf.if %11 {
      %c0_10 = arith.constant 0 : index
      %c0_11 = arith.constant 0 : index
      %12 = vector.load %arg8[%c0_10, %c0_11] : memref<16x256xf32, #tpu.memory_space<vmem>>, vector<16x256xf32>
      %c0_12 = arith.constant 0 : index
      %c0_13 = arith.constant 0 : index
      %13 = vector.load %arg4[%c0_12, %c0_13] : memref<1x256xf32, #tpu.memory_space<vmem>>, vector<1x256xf32>
      %14 = vector.broadcast %13 : vector<1x256xf32> to vector<16x256xf32>
      %15 = arith.addf %12, %14 : vector<16x256xf32>
      %cst_14 = arith.constant 0.000000e+00 : f32
      %16 = vector.broadcast %cst_14 : f32 to vector<16x256xf32>
      %17 = arith.maximumf %15, %16 : vector<16x256xf32>
      %18 = arith.truncf %17 : vector<16x256xf32> to vector<16x256xbf16>
      %c0_15 = arith.constant 0 : index
      %c0_16 = arith.constant 0 : index
      %19 = vector.load %arg5[%c0_15, %c0_16] : memref<256x256xbf16, #tpu.memory_space<vmem>>, vector<256x256xbf16>
      %cst_17 = arith.constant dense<0.000000e+00> : vector<16x256xf32>
      %20 = tpu.matmul %18, %19, %cst_17 {dimension_numbers = #tpu.dot_dimension_numbers<[1], [0], [0], [1], [0, 0, 1, 1], [], []>} : vector<16x256xbf16>, vector<256x256xbf16>, vector<16x256xf32> -> vector<16x256xf32>
      %c0_18 = arith.constant 0 : index
      %c0_19 = arith.constant 0 : index
      %21 = vector.load %arg6[%c0_18, %c0_19] : memref<1x256xf32, #tpu.memory_space<vmem>>, vector<1x256xf32>
      %22 = vector.broadcast %21 : vector<1x256xf32> to vector<16x256xf32>
      %23 = arith.addf %20, %22 : vector<16x256xf32>
      %cst_20 = arith.constant 0.000000e+00 : f32
      %24 = vector.broadcast %cst_20 : f32 to vector<16x256xf32>
      %25 = arith.maximumf %23, %24 : vector<16x256xf32>
      %c0_21 = arith.constant 0 : index
      %c0_22 = arith.constant 0 : index
      %26 = vector.load %arg7[%c0_21, %c0_22] : memref<16x256xf32, #tpu.memory_space<vmem>>, vector<16x256xf32>
      tpu.vector_store %arg7[%c0_21, %c0_22], %25 {strides = array<i32>} : memref<16x256xf32, #tpu.memory_space<vmem>>, vector<16x256xf32>,
    } else {
    }
    return
  }
  func.func @transform_0(%arg0: i32, %arg1: i32) -> (i32, i32) {
    %c0_i32 = arith.constant 0 : i32
    return %arg0, %arg1 : i32, i32
  }
  func.func @transform_1(%arg0: i32, %arg1: i32) -> (i32, i32) {
    %c0_i32 = arith.constant 0 : i32
    %c0_i32_0 = arith.constant 0 : i32
    return %arg1, %c0_i32 : i32, i32
  }
  func.func @transform_2(%arg0: i32, %arg1: i32) -> (i32, i32) {
    %c0_i32 = arith.constant 0 : i32
    %c0_i32_0 = arith.constant 0 : i32
    %c0_i32_1 = arith.constant 0 : i32
    return %c0_i32, %c0_i32_0 : i32, i32
  }
  func.func @transform_3(%arg0: i32, %arg1: i32) -> (i32, i32) {
    %c0_i32 = arith.constant 0 : i32
    %c0_i32_0 = arith.constant 0 : i32
    %c0_i32_1 = arith.constant 0 : i32
    return %c0_i32, %c0_i32_0 : i32, i32
  }
  func.func @transform_4(%arg0: i32, %arg1: i32) -> (i32, i32) {
    %c0_i32 = arith.constant 0 : i32
    %c0_i32_0 = arith.constant 0 : i32
    %c0_i32_1 = arith.constant 0 : i32
    return %c0_i32, %c0_i32_0 : i32, i32
  }
  func.func @transform_5(%arg0: i32, %arg1: i32) -> (i32, i32) {
    %c0_i32 = arith.constant 0 : i32
    %c0_i32_0 = arith.constant 0 : i32
    return %arg0, %c0_i32 : i32, i32
  }
}

</mosaic_0001>

<llo_original>
// kernel: _verification_call.1
$region0: #{_verification_call.1}
  #allocation0 [shape = 'u32[]', space=smem, size = 0x4, offset = 0x4, fixed_abs, tag = 'smem constant byte address 0x4 - core index']
  #allocation1 [shape = 'u32[144,128]{1,0:T(1,128)}', space=vmem, size = 0x12000, scoped, tag = 'internal scratch']
  #allocation2 [shape = 'f32[16,256]{1,0:T(8,128)}', space=vmem, size = 0x4000, scoped, tag = 'scratch operand']
  %s0 = inlined_call_operand.vmem [shape: bf16[16,1024], index: 0, kind: input, shape index: {}]
  %s1 = inlined_call_operand.hbm [shape: bf16[1024,256], index: 1, kind: input, shape index: {}]
  %s2 = inlined_call_operand.vmem [shape: f32[1,256], index: 2, kind: input, shape index: {}]
  %s3 = inlined_call_operand.vmem [shape: bf16[256,256], index: 3, kind: input, shape index: {}]
  %s4 = inlined_call_operand.vmem [shape: f32[1,256], index: 4, kind: input, shape index: {}]
  %s5 = inlined_call_operand.vmem [shape: f32[16,256], index: 5, kind: output, shape index: {}]
  %s6 = sld [smem:[#allocation0]]
  $region42: #{_verification_call.1} parent=0
    _
  %s8 = ssub.s32 1, %s6
  %s9 = scalar_select 0, %s8, %s6
  $region1: #{_verification_call.1} parent=0
    #allocation3 [shape = 'u8[524288]{0}', space=vmem, size = 0x80000, scoped, tag = 'input window, operand 1, single buffered']
    #allocation4 [shape = 's32[1]{0}', space=sflag, size = 0x4, scoped, tag = 'scoped memory for _verification_call.1']
    %10 = vsyncpa [#allocation4], 0
    // Predicated region
    $region2: #{_verification_call.1} parent=1 // pred_check
      _
    $region3: #{_verification_call.1} parent=1 // pred_check_branch
      %12 = sbr.rel (0) target = $region5
    $region4: #{_verification_call.1} parent=1 // pred_region
      _
    $region5: #{_verification_call.1} parent=1 // pred_fallthru
      _
    // Predicated region
    $region6: #{_verification_call.1} parent=1 // pred_check
      _
    $region7: #{_verification_call.1} parent=1 // pred_check_branch
      %14 = sbr.rel (0) target = $region9
    $region8: #{_verification_call.1} parent=1 // pred_region
      %s16 = ssub.s32 16384, 16384
      %17 = vsyncadd [#allocation4], %s16
      %s18 = sshll.u32 [#allocation3], 4
      %s19 = int_to_ptr.vmem [resolvable:$true] %s18
      %24 = dma.hbm_to_vmem [thread:$0]  %s1, 16384, %s19, [#allocation4], 128, 128, 8
    $region9: #{_verification_call.1} parent=1 // pred_fallthru
      _
    // Predicated region
    $region10: #{_verification_call.1} parent=1 // pred_check
      _
    $region11: #{_verification_call.1} parent=1 // pred_check_branch
      %26 = sbr.rel (0) target = $region13
    $region12: #{_verification_call.1} parent=1 // pred_region
      _
    $region13: #{_verification_call.1} parent=1 // pred_fallthru
      _
    // Predicated region
    $region14: #{_verification_call.1} parent=1 // pred_check
      _
    $region15: #{_verification_call.1} parent=1 // pred_check_branch
      %28 = sbr.rel (0) target = $region17
    $region16: #{_verification_call.1} parent=1 // pred_region
      _
    $region17: #{_verification_call.1} parent=1 // pred_fallthru
      _
    // Predicated region
    $region18: #{_verification_call.1} parent=1 // pred_check
      _
    $region19: #{_verification_call.1} parent=1 // pred_check_branch
      %30 = sbr.rel (0) target = $region21
    $region20: #{_verification_call.1} parent=1 // pred_region
      _
    $region21: #{_verification_call.1} parent=1 // pred_fallthru
      _
    // Predicated region
    $region22: #{_verification_call.1} parent=1 // pred_check
      _
    $region23: #{_verification_call.1} parent=1 // pred_check_branch
      %32 = sbr.rel (0) target = $region25
    $region24: #{_verification_call.1} parent=1 // pred_region
      %33 = dma.done [#allocation4], 16384
    $region25: #{_verification_call.1} parent=1 // pred_fallthru
      _
    %p34 = scmp.eq.s32.totalorder 0, 0
    // Predicated region
    $region26: #{_verification_call.1} parent=1 // pred_check
      %p35 = pneg %p34
    $region27: #{_verification_call.1} parent=1 // pred_check_branch
      %37 = sbr.rel (%p35) target = $region29
    $region28: #{_verification_call.1} parent=1 // pred_region
      %38 = vst [vmem:[#allocation2] sm:$0xff] 0.0
      %39 = vst [vmem:[#allocation2 + $0x8] sm:$0xff] 0.0
      %40 = vst [vmem:[#allocation2 + $0x10] sm:$0xff] 0.0
      %41 = vst [vmem:[#allocation2 + $0x18] sm:$0xff] 0.0
    $region29: #{_verification_call.1} parent=1 // pred_fallthru
      _
    %v42 = vld [vmem:[#allocation2] sm:$0xff]
    %v43 = vld [vmem:[#allocation2 + $0x8] sm:$0xff]
    %v44 = vld [vmem:[#allocation2 + $0x10] sm:$0xff]
    %v45 = vld [vmem:[#allocation2 + $0x18] sm:$0xff]
    %v46 = vld [vmem:[%s0] sm:$0xff]
    %v47 = vld [vmem:[%s0 + $0x8] sm:$0xff]
    %v48 = vld [vmem:[%s0 + $0x10] sm:$0xff]
    %v49 = vld [vmem:[%s0 + $0x18] sm:$0xff]
    %v50 = vld [vmem:[%s0 + $0x20] sm:$0xff]
    %v51 = vld [vmem:[%s0 + $0x28] sm:$0xff]
    %v52 = vld [vmem:[%s0 + $0x30] sm:$0xff]
    %v53 = vld [vmem:[%s0 + $0x38] sm:$0xff]
    %v54 = vld [vmem:[#allocation3] sm:$0xff]
    %v55 = vld [vmem:[#allocation3 + $0x8] sm:$0xff]
    %v56 = vld [vmem:[#allocation3 + $0x10] sm:$0xff]
    %v57 = vld [vmem:[#allocation3 + $0x18] sm:$0xff]
    %v58 = vld [vmem:[#allocation3 + $0x20] sm:$0xff]
    %v59 = vld [vmem:[#allocation3 + $0x28] sm:$0xff]
    %v60 = vld [vmem:[#allocation3 + $0x30] sm:$0xff]
    %v61 = vld [vmem:[#allocation3 + $0x38] sm:$0xff]
    %v62 = vld [vmem:[#allocation3 + $0x40] sm:$0xff]
    %v63 = vld [vmem:[#allocation3 + $0x48] sm:$0xff]
    %v64 = vld [vmem:[#allocation3 + $0x50] sm:$0xff]
    %v65 = vld [vmem:[#allocation3 + $0x58] sm:$0xff]
    %v66 = vld [vmem:[#allocation3 + $0x60] sm:$0xff]
    %v67 = vld [vmem:[#allocation3 + $0x68] sm:$0xff]
    %v68 = vld [vmem:[#allocation3 + $0x70] sm:$0xff]
    %v69 = vld [vmem:[#allocation3 + $0x78] sm:$0xff]
    %v70 = vld [vmem:[#allocation3 + $0x80] sm:$0xff]
    %v71 = vld [vmem:[#allocation3 + $0x88] sm:$0xff]
    %v72 = vld [vmem:[#allocation3 + $0x90] sm:$0xff]
    %v73 = vld [vmem:[#allocation3 + $0x98] sm:$0xff]
    %v74 = vld [vmem:[#allocation3 + $0xa0] sm:$0xff]
    %v75 = vld [vmem:[#allocation3 + $0xa8] sm:$0xff]
    %v76 = vld [vmem:[#allocation3 + $0xb0] sm:$0xff]
    %v77 = vld [vmem:[#allocation3 + $0xb8] sm:$0xff]
    %v78 = vld [vmem:[#allocation3 + $0xc0] sm:$0xff]
    %v79 = vld [vmem:[#allocation3 + $0xc8] sm:$0xff]
    %v80 = vld [vmem:[#allocation3 + $0xd0] sm:$0xff]
    %v81 = vld [vmem:[#allocation3 + $0xd8] sm:$0xff]
    %v82 = vld [vmem:[#allocation3 + $0xe0] sm:$0xff]
    %v83 = vld [vmem:[#allocation3 + $0xe8] sm:$0xff]
    %v84 = vld [vmem:[#allocation3 + $0xf0] sm:$0xff]
    %v85 = vld [vmem:[#allocation3 + $0xf8] sm:$0xff]
    %v86 = vld [vmem:[#allocation3 + $0x100] sm:$0xff]
    %v87 = vld [vmem:[#allocation3 + $0x108] sm:$0xff]
    %v88 = vld [vmem:[#allocation3 + $0x110] sm:$0xff]
    %v89 = vld [vmem:[#allocation3 + $0x118] sm:$0xff]
    %v90 = vld [vmem:[#allocation3 + $0x120] sm:$0xff]
    %v91 = vld [vmem:[#allocation3 + $0x128] sm:$0xff]
    %v92 = vld [vmem:[#allocation3 + $0x130] sm:$0xff]
    %v93 = vld [vmem:[#allocation3 + $0x138] sm:$0xff]
    %v94 = vld [vmem:[#allocation3 + $0x140] sm:$0xff]
    %v95 = vld [vmem:[#allocation3 + $0x148] sm:$0xff]
    %v96 = vld [vmem:[#allocation3 + $0x150] sm:$0xff]
    %v97 = vld [vmem:[#allocation3 + $0x158] sm:$0xff]
    %v98 = vld [vmem:[#allocation3 + $0x160] sm:$0xff]
    %v99 = vld [vmem:[#allocation3 + $0x168] sm:$0xff]
    %v100 = vld [vmem:[#allocation3 + $0x170] sm:$0xff]
    %v101 = vld [vmem:[#allocation3 + $0x178] sm:$0xff]
    %v102 = vld [vmem:[#allocation3 + $0x180] sm:$0xff]
    %v103 = vld [vmem:[#allocation3 + $0x188] sm:$0xff]
    %v104 = vld [vmem:[#allocation3 + $0x190] sm:$0xff]
    %v105 = vld [vmem:[#allocation3 + $0x198] sm:$0xff]
    %v106 = vld [vmem:[#allocation3 + $0x1a0] sm:$0xff]
    %v107 = vld [vmem:[#allocation3 + $0x1a8] sm:$0xff]
    %v108 = vld [vmem:[#allocation3 + $0x1b0] sm:$0xff]
    %v109 = vld [vmem:[#allocation3 + $0x1b8] sm:$0xff]
    %v110 = vld [vmem:[#allocation3 + $0x1c0] sm:$0xff]
    %v111 = vld [vmem:[#allocation3 + $0x1c8] sm:$0xff]
    %v112 = vld [vmem:[#allocation3 + $0x1d0] sm:$0xff]
    %v113 = vld [vmem:[#allocation3 + $0x1d8] sm:$0xff]
    %v114 = vld [vmem:[#allocation3 + $0x1e0] sm:$0xff]
    %v115 = vld [vmem:[#allocation3 + $0x1e8] sm:$0xff]
    %v116 = vld [vmem:[#allocation3 + $0x1f0] sm:$0xff]
    %v117 = vld [vmem:[#allocation3 + $0x1f8] sm:$0xff]
    %v118 = vld [vmem:[#allocation3 + $0x200] sm:$0xff]
    %v119 = vld [vmem:[#allocation3 + $0x208] sm:$0xff]
    %v120 = vld [vmem:[#allocation3 + $0x210] sm:$0xff]
    %v121 = vld [vmem:[#allocation3 + $0x218] sm:$0xff]
    %v122 = vld [vmem:[#allocation3 + $0x220] sm:$0xff]
    %v123 = vld [vmem:[#allocation3 + $0x228] sm:$0xff]
    %v124 = vld [vmem:[#allocation3 + $0x230] sm:$0xff]
    %v125 = vld [vmem:[#allocation3 + $0x238] sm:$0xff]
    %v126 = vld [vmem:[#allocation3 + $0x240] sm:$0xff]
    %v127 = vld [vmem:[#allocation3 + $0x248] sm:$0xff]
    %v128 = vld [vmem:[#allocation3 + $0x250] sm:$0xff]
    %v129 = vld [vmem:[#allocation3 + $0x258] sm:$0xff]
    %v130 = vld [vmem:[#allocation3 + $0x260] sm:$0xff]
    %v131 = vld [vmem:[#allocation3 + $0x268] sm:$0xff]
    %v132 = vld [vmem:[#allocation3 + $0x270] sm:$0xff]
    %v133 = vld [vmem:[#allocation3 + $0x278] sm:$0xff]
    %v134 = vld [vmem:[#allocation3 + $0x280] sm:$0xff]
    %v135 = vld [vmem:[#allocation3 + $0x288] sm:$0xff]
    %v136 = vld [vmem:[#allocation3 + $0x290] sm:$0xff]
    %v137 = vld [vmem:[#allocation3 + $0x298] sm:$0xff]
    %v138 = vld [vmem:[#allocation3 + $0x2a0] sm:$0xff]
    %v139 = vld [vmem:[#allocation3 + $0x2a8] sm:$0xff]
    %v140 = vld [vmem:[#allocation3 + $0x2b0] sm:$0xff]
    %v141 = vld [vmem:[#allocation3 + $0x2b8] sm:$0xff]
    %v142 = vld [vmem:[#allocation3 + $0x2c0] sm:$0xff]
    %v143 = vld [vmem:[#allocation3 + $0x2c8] sm:$0xff]
    %v144 = vld [vmem:[#allocation3 + $0x2d0] sm:$0xff]
    %v145 = vld [vmem:[#allocation3 + $0x2d8] sm:$0xff]
    %v146 = vld [vmem:[#allocation3 + $0x2e0] sm:$0xff]
    %v147 = vld [vmem:[#allocation3 + $0x2e8] sm:$0xff]
    %v148 = vld [vmem:[#allocation3 + $0x2f0] sm:$0xff]
    %v149 = vld [vmem:[#allocation3 + $0x2f8] sm:$0xff]
    %v150 = vld [vmem:[#allocation3 + $0x300] sm:$0xff]
    %v151 = vld [vmem:[#allocation3 + $0x308] sm:$0xff]
    %v152 = vld [vmem:[#allocation3 + $0x310] sm:$0xff]
    %v153 = vld [vmem:[#allocation3 + $0x318] sm:$0xff]
    %v154 = vld [vmem:[#allocation3 + $0x320] sm:$0xff]
    %v155 = vld [vmem:[#allocation3 + $0x328] sm:$0xff]
    %v156 = vld [vmem:[#allocation3 + $0x330] sm:$0xff]
    %v157 = vld [vmem:[#allocation3 + $0x338] sm:$0xff]
    %v158 = vld [vmem:[#allocation3 + $0x340] sm:$0xff]
    %v159 = vld [vmem:[#allocation3 + $0x348] sm:$0xff]
    %v160 = vld [vmem:[#allocation3 + $0x350] sm:$0xff]
    %v161 = vld [vmem:[#allocation3 + $0x358] sm:$0xff]
    %v162 = vld [vmem:[#allocation3 + $0x360] sm:$0xff]
    %v163 = vld [vmem:[#allocation3 + $0x368] sm:$0xff]
    %v164 = vld [vmem:[#allocation3 + $0x370] sm:$0xff]
    %v165 = vld [vmem:[#allocation3 + $0x378] sm:$0xff]
    %v166 = vld [vmem:[#allocation3 + $0x380] sm:$0xff]
    %v167 = vld [vmem:[#allocation3 + $0x388] sm:$0xff]
    %v168 = vld [vmem:[#allocation3 + $0x390] sm:$0xff]
    %v169 = vld [vmem:[#allocation3 + $0x398] sm:$0xff]
    %v170 = vld [vmem:[#allocation3 + $0x3a0] sm:$0xff]
    %v171 = vld [vmem:[#allocation3 + $0x3a8] sm:$0xff]
    %v172 = vld [vmem:[#allocation3 + $0x3b0] sm:$0xff]
    %v173 = vld [vmem:[#allocation3 + $0x3b8] sm:$0xff]
    %v174 = vld [vmem:[#allocation3 + $0x3c0] sm:$0xff]
    %v175 = vld [vmem:[#allocation3 + $0x3c8] sm:$0xff]
    %v176 = vld [vmem:[#allocation3 + $0x3d0] sm:$0xff]
    %v177 = vld [vmem:[#allocation3 + $0x3d8] sm:$0xff]
    %v178 = vld [vmem:[#allocation3 + $0x3e0] sm:$0xff]
    %v179 = vld [vmem:[#allocation3 + $0x3e8] sm:$0xff]
    %v180 = vld [vmem:[#allocation3 + $0x3f0] sm:$0xff]
    %v181 = vld [vmem:[#allocation3 + $0x3f8] sm:$0xff]
    %v190 = vunpack.c.l.b16 %v46
    %v191 = vunpack.c.h.b16 %v46
    %v192 = vunpack.c.l.b16 %v47
    %v193 = vunpack.c.h.b16 %v47
    %v194 = vunpack.c.l.b16 %v48
    %v195 = vunpack.c.h.b16 %v48
    %v196 = vunpack.c.l.b16 %v49
    %v197 = vunpack.c.h.b16 %v49
    %v198 = vunpack.c.l.b16 %v50
    %v199 = vunpack.c.h.b16 %v50
    %v200 = vunpack.c.l.b16 %v51
    %v201 = vunpack.c.h.b16 %v51
    %v202 = vunpack.c.l.b16 %v52
    %v203 = vunpack.c.h.b16 %v52
    %v204 = vunpack.c.l.b16 %v53
    %v205 = vunpack.c.h.b16 %v53
    %v206 = vpack.c.b16 %v198, %v190
    %v207 = vpack.c.b16 %v199, %v191
    %v208 = vpack.c.b16 %v200, %v192
    %v209 = vpack.c.b16 %v201, %v193
    %v210 = vpack.c.b16 %v202, %v194
    %v211 = vpack.c.b16 %v203, %v195
    %v212 = vpack.c.b16 %v204, %v196
    %v213 = vpack.c.b16 %v205, %v197
    %v350 = vunpack.c.l.b16 %v54
    %v351 = vunpack.c.h.b16 %v54
    %v352 = vunpack.c.l.b16 %v55
    %v353 = vunpack.c.h.b16 %v55
    %v354 = vunpack.c.l.b16 %v56
    %v355 = vunpack.c.h.b16 %v56
    %v356 = vunpack.c.l.b16 %v57
    %v357 = vunpack.c.h.b16 %v57
    %v358 = vunpack.c.l.b16 %v58
    %v359 = vunpack.c.h.b16 %v58
    %v360 = vunpack.c.l.b16 %v59
    %v361 = vunpack.c.h.b16 %v59
    %v362 = vunpack.c.l.b16 %v60
    %v363 = vunpack.c.h.b16 %v60
    %v364 = vunpack.c.l.b16 %v61
    %v365 = vunpack.c.h.b16 %v61
    %v366 = vunpack.c.l.b16 %v62
    %v367 = vunpack.c.h.b16 %v62
    %v368 = vunpack.c.l.b16 %v63
    %v369 = vunpack.c.h.b16 %v63
    %v370 = vunpack.c.l.b16 %v64
    %v371 = vunpack.c.h.b16 %v64
    %v372 = vunpack.c.l.b16 %v65
    %v373 = vunpack.c.h.b16 %v65
    %v374 = vunpack.c.l.b16 %v66
    %v375 = vunpack.c.h.b16 %v66
    %v376 = vunpack.c.l.b16 %v67
    %v377 = vunpack.c.h.b16 %v67
    %v378 = vunpack.c.l.b16 %v68
    %v379 = vunpack.c.h.b16 %v68
    %v380 = vunpack.c.l.b16 %v69
    %v381 = vunpack.c.h.b16 %v69
    %v382 = vunpack.c.l.b16 %v70
    %v383 = vunpack.c.h.b16 %v70
    %v384 = vunpack.c.l.b16 %v71
    %v385 = vunpack.c.h.b16 %v71
    %v386 = vunpack.c.l.b16 %v72
    %v387 = vunpack.c.h.b16 %v72
    %v388 = vunpack.c.l.b16 %v73
    %v389 = vunpack.c.h.b16 %v73
    %v390 = vunpack.c.l.b16 %v74
    %v391 = vunpack.c.h.b16 %v74
    %v392 = vunpack.c.l.b16 %v75
    %v393 = vunpack.c.h.b16 %v75
    %v394 = vunpack.c.l.b16 %v76
    %v395 = vunpack.c.h.b16 %v76
    %v396 = vunpack.c.l.b16 %v77
    %v397 = vunpack.c.h.b16 %v77
    %v398 = vunpack.c.l.b16 %v78
    %v399 = vunpack.c.h.b16 %v78
    %v400 = vunpack.c.l.b16 %v79
    %v401 = vunpack.c.h.b16 %v79
    %v402 = vunpack.c.l.b16 %v80
    %v403 = vunpack.c.h.b16 %v80
    %v404 = vunpack.c.l.b16 %v81
    %v405 = vunpack.c.h.b16 %v81
    %v406 = vunpack.c.l.b16 %v82
    %v407 = vunpack.c.h.b16 %v82
    %v408 = vunpack.c.l.b16 %v83
    %v409 = vunpack.c.h.b16 %v83
    %v410 = vunpack.c.l.b16 %v84
    %v411 = vunpack.c.h.b16 %v84
    %v412 = vunpack.c.l.b16 %v85
    %v413 = vunpack.c.h.b16 %v85
    %v414 = vunpack.c.l.b16 %v86
    %v415 = vunpack.c.h.b16 %v86
    %v416 = vunpack.c.l.b16 %v87
    %v417 = vunpack.c.h.b16 %v87
    %v418 = vunpack.c.l.b16 %v88
    %v419 = vunpack.c.h.b16 %v88
    %v420 = vunpack.c.l.b16 %v89
    %v421 = vunpack.c.h.b16 %v89
    %v422 = vunpack.c.l.b16 %v90
    %v423 = vunpack.c.h.b16 %v90
    %v424 = vunpack.c.l.b16 %v91
    %v425 = vunpack.c.h.b16 %v91
    %v426 = vunpack.c.l.b16 %v92
    %v427 = vunpack.c.h.b16 %v92
    %v428 = vunpack.c.l.b16 %v93
    %v429 = vunpack.c.h.b16 %v93
    %v430 = vunpack.c.l.b16 %v94
    %v431 = vunpack.c.h.b16 %v94
    %v432 = vunpack.c.l.b16 %v95
    %v433 = vunpack.c.h.b16 %v95
    %v434 = vunpack.c.l.b16 %v96
    %v435 = vunpack.c.h.b16 %v96
    %v436 = vunpack.c.l.b16 %v97
    %v437 = vunpack.c.h.b16 %v97
    %v438 = vunpack.c.l.b16 %v98
    %v439 = vunpack.c.h.b16 %v98
    %v440 = vunpack.c.l.b16 %v99
    %v441 = vunpack.c.h.b16 %v99
    %v442 = vunpack.c.l.b16 %v100
    %v443 = vunpack.c.h.b16 %v100
    %v444 = vunpack.c.l.b16 %v101
    %v445 = vunpack.c.h.b16 %v101
    %v446 = vunpack.c.l.b16 %v102
    %v447 = vunpack.c.h.b16 %v102
    %v448 = vunpack.c.l.b16 %v103
    %v449 = vunpack.c.h.b16 %v103
    %v450 = vunpack.c.l.b16 %v104
    %v451 = vunpack.c.h.b16 %v104
    %v452 = vunpack.c.l.b16 %v105
    %v453 = vunpack.c.h.b16 %v105
    %v454 = vunpack.c.l.b16 %v106
    %v455 = vunpack.c.h.b16 %v106
    %v456 = vunpack.c.l.b16 %v107
    %v457 = vunpack.c.h.b16 %v107
    %v458 = vunpack.c.l.b16 %v108
    %v459 = vunpack.c.h.b16 %v108
    %v460 = vunpack.c.l.b16 %v109
    %v461 = vunpack.c.h.b16 %v109
    %v462 = vunpack.c.l.b16 %v110
    %v463 = vunpack.c.h.b16 %v110
    %v464 = vunpack.c.l.b16 %v111
    %v465 = vunpack.c.h.b16 %v111
    %v466 = vunpack.c.l.b16 %v112
    %v467 = vunpack.c.h.b16 %v112
    %v468 = vunpack.c.l.b16 %v113
    %v469 = vunpack.c.h.b16 %v113
    %v470 = vunpack.c.l.b16 %v114
    %v471 = vunpack.c.h.b16 %v114
    %v472 = vunpack.c.l.b16 %v115
    %v473 = vunpack.c.h.b16 %v115
    %v474 = vunpack.c.l.b16 %v116
    %v475 = vunpack.c.h.b16 %v116
    %v476 = vunpack.c.l.b16 %v117
    %v477 = vunpack.c.h.b16 %v117
    %v478 = vunpack.c.l.b16 %v118
    %v479 = vunpack.c.h.b16 %v118
    %v480 = vunpack.c.l.b16 %v119
    %v481 = vunpack.c.h.b16 %v119
    %v482 = vunpack.c.l.b16 %v120
    %v483 = vunpack.c.h.b16 %v120
    %v484 = vunpack.c.l.b16 %v121
    %v485 = vunpack.c.h.b16 %v121
    %v486 = vunpack.c.l.b16 %v122
    %v487 = vunpack.c.h.b16 %v122
    %v488 = vunpack.c.l.b16 %v123
    %v489 = vunpack.c.h.b16 %v123
    %v490 = vunpack.c.l.b16 %v124
    %v491 = vunpack.c.h.b16 %v124
    %v492 = vunpack.c.l.b16 %v125
    %v493 = vunpack.c.h.b16 %v125
    %v494 = vunpack.c.l.b16 %v126
    %v495 = vunpack.c.h.b16 %v126
    %v496 = vunpack.c.l.b16 %v127
    %v497 = vunpack.c.h.b16 %v127
    %v498 = vunpack.c.l.b16 %v128
    %v499 = vunpack.c.h.b16 %v128
    %v500 = vunpack.c.l.b16 %v129
    %v501 = vunpack.c.h.b16 %v129
    %v502 = vunpack.c.l.b16 %v130
    %v503 = vunpack.c.h.b16 %v130
    %v504 = vunpack.c.l.b16 %v131
    %v505 = vunpack.c.h.b16 %v131
    %v506 = vunpack.c.l.b16 %v132
    %v507 = vunpack.c.h.b16 %v132
    %v508 = vunpack.c.l.b16 %v133
    %v509 = vunpack.c.h.b16 %v133
    %v510 = vunpack.c.l.b16 %v134
    %v511 = vunpack.c.h.b16 %v134
    %v512 = vunpack.c.l.b16 %v135
    %v513 = vunpack.c.h.b16 %v135
    %v514 = vunpack.c.l.b16 %v136
    %v515 = vunpack.c.h.b16 %v136
    %v516 = vunpack.c.l.b16 %v137
    %v517 = vunpack.c.h.b16 %v137
    %v518 = vunpack.c.l.b16 %v138
    %v519 = vunpack.c.h.b16 %v138
    %v520 = vunpack.c.l.b16 %v139
    %v521 = vunpack.c.h.b16 %v139
    %v522 = vunpack.c.l.b16 %v140
    %v523 = vunpack.c.h.b16 %v140
    %v524 = vunpack.c.l.b16 %v141
    %v525 = vunpack.c.h.b16 %v141
    %v526 = vunpack.c.l.b16 %v142
    %v527 = vunpack.c.h.b16 %v142
    %v528 = vunpack.c.l.b16 %v143
    %v529 = vunpack.c.h.b16 %v143
    %v530 = vunpack.c.l.b16 %v144
    %v531 = vunpack.c.h.b16 %v144
    %v532 = vunpack.c.l.b16 %v145
    %v533 = vunpack.c.h.b16 %v145
    %v534 = vunpack.c.l.b16 %v146
    %v535 = vunpack.c.h.b16 %v146
    %v536 = vunpack.c.l.b16 %v147
    %v537 = vunpack.c.h.b16 %v147
    %v538 = vunpack.c.l.b16 %v148
    %v539 = vunpack.c.h.b16 %v148
    %v540 = vunpack.c.l.b16 %v149
    %v541 = vunpack.c.h.b16 %v149
    %v542 = vunpack.c.l.b16 %v150
    %v543 = vunpack.c.h.b16 %v150
    %v544 = vunpack.c.l.b16 %v151
    %v545 = vunpack.c.h.b16 %v151
    %v546 = vunpack.c.l.b16 %v152
    %v547 = vunpack.c.h.b16 %v152
    %v548 = vunpack.c.l.b16 %v153
    %v549 = vunpack.c.h.b16 %v153
    %v550 = vunpack.c.l.b16 %v154
    %v551 = vunpack.c.h.b16 %v154
    %v552 = vunpack.c.l.b16 %v155
    %v553 = vunpack.c.h.b16 %v155
    %v554 = vunpack.c.l.b16 %v156
    %v555 = vunpack.c.h.b16 %v156
    %v556 = vunpack.c.l.b16 %v157
    %v557 = vunpack.c.h.b16 %v157
    %v558 = vunpack.c.l.b16 %v158
    %v559 = vunpack.c.h.b16 %v158
    %v560 = vunpack.c.l.b16 %v159
    %v561 = vunpack.c.h.b16 %v159
    %v562 = vunpack.c.l.b16 %v160
    %v563 = vunpack.c.h.b16 %v160
    %v564 = vunpack.c.l.b16 %v161
    %v565 = vunpack.c.h.b16 %v161
    %v566 = vunpack.c.l.b16 %v162
    %v567 = vunpack.c.h.b16 %v162
    %v568 = vunpack.c.l.b16 %v163
    %v569 = vunpack.c.h.b16 %v163
    %v570 = vunpack.c.l.b16 %v164
    %v571 = vunpack.c.h.b16 %v164
    %v572 = vunpack.c.l.b16 %v165
    %v573 = vunpack.c.h.b16 %v165
    %v574 = vunpack.c.l.b16 %v166
    %v575 = vunpack.c.h.b16 %v166
    %v576 = vunpack.c.l.b16 %v167
    %v577 = vunpack.c.h.b16 %v167
    %v578 = vunpack.c.l.b16 %v168
    %v579 = vunpack.c.h.b16 %v168
    %v580 = vunpack.c.l.b16 %v169
    %v581 = vunpack.c.h.b16 %v169
    %v582 = vunpack.c.l.b16 %v170
    %v583 = vunpack.c.h.b16 %v170
    %v584 = vunpack.c.l.b16 %v171
    %v585 = vunpack.c.h.b16 %v171
    %v586 = vunpack.c.l.b16 %v172
    %v587 = vunpack.c.h.b16 %v172
    %v588 = vunpack.c.l.b16 %v173
    %v589 = vunpack.c.h.b16 %v173
    %v590 = vunpack.c.l.b16 %v174
    %v591 = vunpack.c.h.b16 %v174
    %v592 = vunpack.c.l.b16 %v175
    %v593 = vunpack.c.h.b16 %v175
    %v594 = vunpack.c.l.b16 %v176
    %v595 = vunpack.c.h.b16 %v176
    %v596 = vunpack.c.l.b16 %v177
    %v597 = vunpack.c.h.b16 %v177
    %v598 = vunpack.c.l.b16 %v178
    %v599 = vunpack.c.h.b16 %v178
    %v600 = vunpack.c.l.b16 %v179
    %v601 = vunpack.c.h.b16 %v179
    %v602 = vunpack.c.l.b16 %v180
    %v603 = vunpack.c.h.b16 %v180
    %v604 = vunpack.c.l.b16 %v181
    %v605 = vunpack.c.h.b16 %v181
    %v606 = vpack.c.b16 %v352, %v350
    %v607 = vpack.c.b16 %v353, %v351
    %v608 = vpack.c.b16 %v356, %v354
    %v609 = vpack.c.b16 %v357, %v355
    %v610 = vpack.c.b16 %v360, %v358
    %v611 = vpack.c.b16 %v361, %v359
    %v612 = vpack.c.b16 %v364, %v362
    %v613 = vpack.c.b16 %v365, %v363
    %v614 = vpack.c.b16 %v368, %v366
    %v615 = vpack.c.b16 %v369, %v367
    %v616 = vpack.c.b16 %v372, %v370
    %v617 = vpack.c.b16 %v373, %v371
    %v618 = vpack.c.b16 %v376, %v374
    %v619 = vpack.c.b16 %v377, %v375
    %v620 = vpack.c.b16 %v380, %v378
    %v621 = vpack.c.b16 %v381, %v379
    %v622 = vpack.c.b16 %v384, %v382
    %v623 = vpack.c.b16 %v385, %v383
    %v624 = vpack.c.b16 %v388, %v386
    %v625 = vpack.c.b16 %v389, %v387
    %v626 = vpack.c.b16 %v392, %v390
    %v627 = vpack.c.b16 %v393, %v391
    %v628 = vpack.c.b16 %v396, %v394
    %v629 = vpack.c.b16 %v397, %v395
    %v630 = vpack.c.b16 %v400, %v398
    %v631 = vpack.c.b16 %v401, %v399
    %v632 = vpack.c.b16 %v404, %v402
    %v633 = vpack.c.b16 %v405, %v403
    %v634 = vpack.c.b16 %v408, %v406
    %v635 = vpack.c.b16 %v409, %v407
    %v636 = vpack.c.b16 %v412, %v410
    %v637 = vpack.c.b16 %v413, %v411
    %v638 = vpack.c.b16 %v416, %v414
    %v639 = vpack.c.b16 %v417, %v415
    %v640 = vpack.c.b16 %v420, %v418
    %v641 = vpack.c.b16 %v421, %v419
    %v642 = vpack.c.b16 %v424, %v422
    %v643 = vpack.c.b16 %v425, %v423
    %v644 = vpack.c.b16 %v428, %v426
    %v645 = vpack.c.b16 %v429, %v427
    %v646 = vpack.c.b16 %v432, %v430
    %v647 = vpack.c.b16 %v433, %v431
    %v648 = vpack.c.b16 %v436, %v434
    %v649 = vpack.c.b16 %v437, %v435
    %v650 = vpack.c.b16 %v440, %v438
    %v651 = vpack.c.b16 %v441, %v439
    %v652 = vpack.c.b16 %v444, %v442
    %v653 = vpack.c.b16 %v445, %v443
    %v654 = vpack.c.b16 %v448, %v446
    %v655 = vpack.c.b16 %v449, %v447
    %v656 = vpack.c.b16 %v452, %v450
    %v657 = vpack.c.b16 %v453, %v451
    %v658 = vpack.c.b16 %v456, %v454
    %v659 = vpack.c.b16 %v457, %v455
    %v660 = vpack.c.b16 %v460, %v458
    %v661 = vpack.c.b16 %v461, %v459
    %v662 = vpack.c.b16 %v464, %v462
    %v663 = vpack.c.b16 %v465, %v463
    %v664 = vpack.c.b16 %v468, %v466
    %v665 = vpack.c.b16 %v469, %v467
    %v666 = vpack.c.b16 %v472, %v470
    %v667 = vpack.c.b16 %v473, %v471
    %v668 = vpack.c.b16 %v476, %v474
    %v669 = vpack.c.b16 %v477, %v475
    %v670 = vpack.c.b16 %v480, %v478
    %v671 = vpack.c.b16 %v481, %v479
    %v672 = vpack.c.b16 %v484, %v482
    %v673 = vpack.c.b16 %v485, %v483
    %v674 = vpack.c.b16 %v488, %v486
    %v675 = vpack.c.b16 %v489, %v487
    %v676 = vpack.c.b16 %v492, %v490
    %v677 = vpack.c.b16 %v493, %v491
    %v678 = vpack.c.b16 %v496, %v494
    %v679 = vpack.c.b16 %v497, %v495
    %v680 = vpack.c.b16 %v500, %v498
    %v681 = vpack.c.b16 %v501, %v499
    %v682 = vpack.c.b16 %v504, %v502
    %v683 = vpack.c.b16 %v505, %v503
    %v684 = vpack.c.b16 %v508, %v506
    %v685 = vpack.c.b16 %v509, %v507
    %v686 = vpack.c.b16 %v512, %v510
    %v687 = vpack.c.b16 %v513, %v511
    %v688 = vpack.c.b16 %v516, %v514
    %v689 = vpack.c.b16 %v517, %v515
    %v690 = vpack.c.b16 %v520, %v518
    %v691 = vpack.c.b16 %v521, %v519
    %v692 = vpack.c.b16 %v524, %v522
    %v693 = vpack.c.b16 %v525, %v523
    %v694 = vpack.c.b16 %v528, %v526
    %v695 = vpack.c.b16 %v529, %v527
    %v696 = vpack.c.b16 %v532, %v530
    %v697 = vpack.c.b16 %v533, %v531
    %v698 = vpack.c.b16 %v536, %v534
    %v699 = vpack.c.b16 %v537, %v535
    %v700 = vpack.c.b16 %v540, %v538
    %v701 = vpack.c.b16 %v541, %v539
    %v702 = vpack.c.b16 %v544, %v542
    %v703 = vpack.c.b16 %v545, %v543
    %v704 = vpack.c.b16 %v548, %v546
    %v705 = vpack.c.b16 %v549, %v547
    %v706 = vpack.c.b16 %v552, %v550
    %v707 = vpack.c.b16 %v553, %v551
    %v708 = vpack.c.b16 %v556, %v554
    %v709 = vpack.c.b16 %v557, %v555
    %v710 = vpack.c.b16 %v560, %v558
    %v711 = vpack.c.b16 %v561, %v559
    %v712 = vpack.c.b16 %v564, %v562
    %v713 = vpack.c.b16 %v565, %v563
    %v714 = vpack.c.b16 %v568, %v566
    %v715 = vpack.c.b16 %v569, %v567
    %v716 = vpack.c.b16 %v572, %v570
    %v717 = vpack.c.b16 %v573, %v571
    %v718 = vpack.c.b16 %v576, %v574
    %v719 = vpack.c.b16 %v577, %v575
    %v720 = vpack.c.b16 %v580, %v578
    %v721 = vpack.c.b16 %v581, %v579
    %v722 = vpack.c.b16 %v584, %v582
    %v723 = vpack.c.b16 %v585, %v583
    %v724 = vpack.c.b16 %v588, %v586
    %v725 = vpack.c.b16 %v589, %v587
    %v726 = vpack.c.b16 %v592, %v590
    %v727 = vpack.c.b16 %v593, %v591
    %v728 = vpack.c.b16 %v596, %v594
    %v729 = vpack.c.b16 %v597, %v595
    %v730 = vpack.c.b16 %v600, %v598
    %v731 = vpack.c.b16 %v601, %v599
    %v732 = vpack.c.b16 %v604, %v602
    %v733 = vpack.c.b16 %v605, %v603
    %862 = vmatprep.subr.bf16.mxu0 %v621
    %863 = vmatpush1.bf16.msra.mxu0 %v620
    %864 = vmatprep.subr.bf16.mxu0 %v619
    %865 = vmatpush1.bf16.msra.mxu0 %v618
    %866 = vmatprep.subr.bf16.mxu0 %v617
    %867 = vmatpush1.bf16.msra.mxu0 %v616
    %868 = vmatprep.subr.bf16.mxu0 %v615
    %869 = vmatpush1.bf16.msra.mxu0 %v614
    %870 = vmatprep.subr.bf16.mxu0 %v613
    %871 = vmatpush1.bf16.msra.mxu0 %v612
    %872 = vmatprep.subr.bf16.mxu0 %v611
    %873 = vmatpush1.bf16.msra.mxu0 %v610
    %874 = vmatprep.subr.bf16.mxu0 %v609
    %875 = vmatpush1.bf16.msra.mxu0 %v608
    %876 = vmatprep.subr.bf16.mxu0 %v607
    %877 = vmatpush1.bf16.msra.mxu0 %v606
    %878 = vmatprep.subr.bf16.mxu0 %v637
    %879 = vmatpush2.bf16.msra.mxu0 %v636
    %880 = vmatprep.subr.bf16.mxu0 %v635
    %881 = vmatpush2.bf16.msra.mxu0 %v634
    %882 = vmatprep.subr.bf16.mxu0 %v633
    %883 = vmatpush2.bf16.msra.mxu0 %v632
    %884 = vmatprep.subr.bf16.mxu0 %v631
    %885 = vmatpush2.bf16.msra.mxu0 %v630
    %886 = vmatprep.subr.bf16.mxu0 %v629
    %887 = vmatpush2.bf16.msra.mxu0 %v628
    %888 = vmatprep.subr.bf16.mxu0 %v627
    %889 = vmatpush2.bf16.msra.mxu0 %v626
    %890 = vmatprep.subr.bf16.mxu0 %v625
    %891 = vmatpush2.bf16.msra.mxu0 %v624
    %892 = vmatprep.subr.bf16.mxu0 %v623
    %893 = vmatpush2.bf16.msra.mxu0 %v622
    %894 = vmatprep.mubr.bf16.mxu0 %v207
    %895 = vmatmul.mubr.bf16.gmra.mxu0 %v206
    %v896 = vpop.f32.mrf.mxu0
    %v897 = vadd.f32 0.0, %v896
    %v898 = vpop.f32.mrf.mxu0
    %v899 = vadd.f32 0.0, %v898
    %v900 = vpop.f32.mrf.mxu0
    %v901 = vadd.f32 0.0, %v900
    %v902 = vpop.f32.mrf.mxu0
    %v903 = vadd.f32 0.0, %v902
    %904 = vdwg.mxu0
    %905 = vmatprep.subr.bf16.mxu0 %v653
    %906 = vmatpush1.bf16.msra.mxu0 %v652
    %907 = vmatprep.subr.bf16.mxu0 %v651
    %908 = vmatpush1.bf16.msra.mxu0 %v650
    %909 = vmatprep.subr.bf16.mxu0 %v649
    %910 = vmatpush1.bf16.msra.mxu0 %v648
    %911 = vmatprep.subr.bf16.mxu0 %v647
    %912 = vmatpush1.bf16.msra.mxu0 %v646
    %913 = vmatprep.subr.bf16.mxu0 %v645
    %914 = vmatpush1.bf16.msra.mxu0 %v644
    %915 = vmatprep.subr.bf16.mxu0 %v643
    %916 = vmatpush1.bf16.msra.mxu0 %v642
    %917 = vmatprep.subr.bf16.mxu0 %v641
    %918 = vmatpush1.bf16.msra.mxu0 %v640
    %919 = vmatprep.subr.bf16.mxu0 %v639
    %920 = vmatpush1.bf16.msra.mxu0 %v638
    %921 = vmatprep.subr.bf16.mxu0 %v669
    %922 = vmatpush2.bf16.msra.mxu0 %v668
    %923 = vmatprep.subr.bf16.mxu0 %v667
    %924 = vmatpush2.bf16.msra.mxu0 %v666
    %925 = vmatprep.subr.bf16.mxu0 %v665
    %926 = vmatpush2.bf16.msra.mxu0 %v664
    %927 = vmatprep.subr.bf16.mxu0 %v663
    %928 = vmatpush2.bf16.msra.mxu0 %v662
    %929 = vmatprep.subr.bf16.mxu0 %v661
    %930 = vmatpush2.bf16.msra.mxu0 %v660
    %931 = vmatprep.subr.bf16.mxu0 %v659
    %932 = vmatpush2.bf16.msra.mxu0 %v658
    %933 = vmatprep.subr.bf16.mxu0 %v657
    %934 = vmatpush2.bf16.msra.mxu0 %v656
    %935 = vmatprep.subr.bf16.mxu0 %v655
    %936 = vmatpush2.bf16.msra.mxu0 %v654
    %937 = vmatprep.mubr.bf16.mxu0 %v209
    %938 = vmatmul.mubr.bf16.gmra.mxu0 %v208
    %v939 = vpop.f32.mrf.mxu0
    %v940 = vadd.f32 %v897, %v939
    %v941 = vpop.f32.mrf.mxu0
    %v942 = vadd.f32 %v899, %v941
    %v943 = vpop.f32.mrf.mxu0
    %v944 = vadd.f32 %v901, %v943
    %v945 = vpop.f32.mrf.mxu0
    %v946 = vadd.f32 %v903, %v945
    %947 = vdwg.mxu0
    %948 = vmatprep.subr.bf16.mxu0 %v685
    %949 = vmatpush1.bf16.msra.mxu0 %v684
    %950 = vmatprep.subr.bf16.mxu0 %v683
    %951 = vmatpush1.bf16.msra.mxu0 %v682
    %952 = vmatprep.subr.bf16.mxu0 %v681
    %953 = vmatpush1.bf16.msra.mxu0 %v680
    %954 = vmatprep.subr.bf16.mxu0 %v679
    %955 = vmatpush1.bf16.msra.mxu0 %v678
    %956 = vmatprep.subr.bf16.mxu0 %v677
    %957 = vmatpush1.bf16.msra.mxu0 %v676
    %958 = vmatprep.subr.bf16.mxu0 %v675
    %959 = vmatpush1.bf16.msra.mxu0 %v674
    %960 = vmatprep.subr.bf16.mxu0 %v673
    %961 = vmatpush1.bf16.msra.mxu0 %v672
    %962 = vmatprep.subr.bf16.mxu0 %v671
    %963 = vmatpush1.bf16.msra.mxu0 %v670
    %964 = vmatprep.subr.bf16.mxu0 %v701
    %965 = vmatpush2.bf16.msra.mxu0 %v700
    %966 = vmatprep.subr.bf16.mxu0 %v699
    %967 = vmatpush2.bf16.msra.mxu0 %v698
    %968 = vmatprep.subr.bf16.mxu0 %v697
    %969 = vmatpush2.bf16.msra.mxu0 %v696
    %970 = vmatprep.subr.bf16.mxu0 %v695
    %971 = vmatpush2.bf16.msra.mxu0 %v694
    %972 = vmatprep.subr.bf16.mxu0 %v693
    %973 = vmatpush2.bf16.msra.mxu0 %v692
    %974 = vmatprep.subr.bf16.mxu0 %v691
    %975 = vmatpush2.bf16.msra.mxu0 %v690
    %976 = vmatprep.subr.bf16.mxu0 %v689
    %977 = vmatpush2.bf16.msra.mxu0 %v688
    %978 = vmatprep.subr.bf16.mxu0 %v687
    %979 = vmatpush2.bf16.msra.mxu0 %v686
    %980 = vmatprep.mubr.bf16.mxu0 %v211
    %981 = vmatmul.mubr.bf16.gmra.mxu0 %v210
    %v982 = vpop.f32.mrf.mxu0
    %v983 = vadd.f32 %v940, %v982
    %v984 = vpop.f32.mrf.mxu0
    %v985 = vadd.f32 %v942, %v984
    %v986 = vpop.f32.mrf.mxu0
    %v987 = vadd.f32 %v944, %v986
    %v988 = vpop.f32.mrf.mxu0
    %v989 = vadd.f32 %v946, %v988
    %990 = vdwg.mxu0
    %991 = vmatprep.subr.bf16.mxu0 %v717
    %992 = vmatpush1.bf16.msra.mxu0 %v716
    %993 = vmatprep.subr.bf16.mxu0 %v715
    %994 = vmatpush1.bf16.msra.mxu0 %v714
    %995 = vmatprep.subr.bf16.mxu0 %v713
    %996 = vmatpush1.bf16.msra.mxu0 %v712
    %997 = vmatprep.subr.bf16.mxu0 %v711
    %998 = vmatpush1.bf16.msra.mxu0 %v710
    %999 = vmatprep.subr.bf16.mxu0 %v709
    %1000 = vmatpush1.bf16.msra.mxu0 %v708
    %1001 = vmatprep.subr.bf16.mxu0 %v707
    %1002 = vmatpush1.bf16.msra.mxu0 %v706
    %1003 = vmatprep.subr.bf16.mxu0 %v705
    %1004 = vmatpush1.bf16.msra.mxu0 %v704
    %1005 = vmatprep.subr.bf16.mxu0 %v703
    %1006 = vmatpush1.bf16.msra.mxu0 %v702
    %1007 = vmatprep.subr.bf16.mxu0 %v733
    %1008 = vmatpush2.bf16.msra.mxu0 %v732
    %1009 = vmatprep.subr.bf16.mxu0 %v731
    %1010 = vmatpush2.bf16.msra.mxu0 %v730
    %1011 = vmatprep.subr.bf16.mxu0 %v729
    %1012 = vmatpush2.bf16.msra.mxu0 %v728
    %1013 = vmatprep.subr.bf16.mxu0 %v727
    %1014 = vmatpush2.bf16.msra.mxu0 %v726
    %1015 = vmatprep.subr.bf16.mxu0 %v725
    %1016 = vmatpush2.bf16.msra.mxu0 %v724
    %1017 = vmatprep.subr.bf16.mxu0 %v723
    %1018 = vmatpush2.bf16.msra.mxu0 %v722
    %1019 = vmatprep.subr.bf16.mxu0 %v721
    %1020 = vmatpush2.bf16.msra.mxu0 %v720
    %1021 = vmatprep.subr.bf16.mxu0 %v719
    %1022 = vmatpush2.bf16.msra.mxu0 %v718
    %1023 = vmatprep.mubr.bf16.mxu0 %v213
    %1024 = vmatmul.mubr.bf16.gmra.mxu0 %v212
    %v1025 = vpop.f32.mrf.mxu0
    %v1026 = vadd.f32 %v983, %v1025
    %v1027 = vpop.f32.mrf.mxu0
    %v1028 = vadd.f32 %v985, %v1027
    %v1029 = vpop.f32.mrf.mxu0
    %v1030 = vadd.f32 %v987, %v1029
    %v1031 = vpop.f32.mrf.mxu0
    %v1032 = vadd.f32 %v989, %v1031
    %1033 = vdwg.mxu0
    %v1034 = vadd.f32 %v42, %v1026
    %v1035 = vadd.f32 %v43, %v1028
    %v1036 = vadd.f32 %v44, %v1030
    %v1037 = vadd.f32 %v45, %v1032
    %1038 = vst [vmem:[#allocation2] sm:$0xff] %v1034
    %1039 = vst [vmem:[#allocation2 + $0x8] sm:$0xff] %v1035
    %1040 = vst [vmem:[#allocation2 + $0x10] sm:$0xff] %v1036
    %1041 = vst [vmem:[#allocation2 + $0x18] sm:$0xff] %v1037
    // Predicated region
    $region30: #{_verification_call.1} parent=1 // pred_check
      %p1042 = pneg %p34
    $region31: #{_verification_call.1} parent=1 // pred_check_branch
      %1044 = sbr.rel (%p1042) target = $region33
    $region32: #{_verification_call.1} parent=1 // pred_region
      %v1045 = vld [vmem:[#allocation2] sm:$0xff]
      %v1046 = vld [vmem:[#allocation2 + $0x8] sm:$0xff]
      %v1047 = vld [vmem:[#allocation2 + $0x10] sm:$0xff]
      %v1048 = vld [vmem:[#allocation2 + $0x18] sm:$0xff]
      %v1049 = vld [vmem:[%s2] sm:$0x3]
      %v1051 = vlaneseq
      %v1052 = vshrl.u32 %v1051, 7
      %v1053 = vsub.s32 0, %v1052
      %v1054 = vrot.slane %v1049, %v1053
      %v1055 = vlaneseq
      %v1056 = vshrl.u32 %v1055, 7
      %v1057 = vsub.s32 1, %v1056
      %v1058 = vrot.slane %v1049, %v1057
      %v1061 = vadd.f32 %v1045, %v1054
      %v1062 = vadd.f32 %v1046, %v1058
      %v1063 = vadd.f32 %v1047, %v1054
      %v1064 = vadd.f32 %v1048, %v1058
      %v1065 = vmax.f32 %v1061, 0.0
      %v1066 = vmax.f32 %v1062, 0.0
      %v1067 = vmax.f32 %v1063, 0.0
      %v1068 = vmax.f32 %v1064, 0.0
      %v1069 = vpack.c.bf16 %v1067, %v1065
      %v1070 = vpack.c.bf16 %v1068, %v1066
      %v1071 = vld [vmem:[%s3] sm:$0xff]
      %v1072 = vld [vmem:[%s3 + $0x8] sm:$0xff]
      %v1073 = vld [vmem:[%s3 + $0x10] sm:$0xff]
      %v1074 = vld [vmem:[%s3 + $0x18] sm:$0xff]
      %v1075 = vld [vmem:[%s3 + $0x20] sm:$0xff]
      %v1076 = vld [vmem:[%s3 + $0x28] sm:$0xff]
      %v1077 = vld [vmem:[%s3 + $0x30] sm:$0xff]
      %v1078 = vld [vmem:[%s3 + $0x38] sm:$0xff]
      %v1079 = vld [vmem:[%s3 + $0x40] sm:$0xff]
      %v1080 = vld [vmem:[%s3 + $0x48] sm:$0xff]
      %v1081 = vld [vmem:[%s3 + $0x50] sm:$0xff]
      %v1082 = vld [vmem:[%s3 + $0x58] sm:$0xff]
      %v1083 = vld [vmem:[%s3 + $0x60] sm:$0xff]
      %v1084 = vld [vmem:[%s3 + $0x68] sm:$0xff]
      %v1085 = vld [vmem:[%s3 + $0x70] sm:$0xff]
      %v1086 = vld [vmem:[%s3 + $0x78] sm:$0xff]
      %v1087 = vld [vmem:[%s3 + $0x80] sm:$0xff]
      %v1088 = vld [vmem:[%s3 + $0x88] sm:$0xff]
      %v1089 = vld [vmem:[%s3 + $0x90] sm:$0xff]
      %v1090 = vld [vmem:[%s3 + $0x98] sm:$0xff]
      %v1091 = vld [vmem:[%s3 + $0xa0] sm:$0xff]
      %v1092 = vld [vmem:[%s3 + $0xa8] sm:$0xff]
      %v1093 = vld [vmem:[%s3 + $0xb0] sm:$0xff]
      %v1094 = vld [vmem:[%s3 + $0xb8] sm:$0xff]
      %v1095 = vld [vmem:[%s3 + $0xc0] sm:$0xff]
      %v1096 = vld [vmem:[%s3 + $0xc8] sm:$0xff]
      %v1097 = vld [vmem:[%s3 + $0xd0] sm:$0xff]
      %v1098 = vld [vmem:[%s3 + $0xd8] sm:$0xff]
      %v1099 = vld [vmem:[%s3 + $0xe0] sm:$0xff]
      %v1100 = vld [vmem:[%s3 + $0xe8] sm:$0xff]
      %v1101 = vld [vmem:[%s3 + $0xf0] sm:$0xff]
      %v1102 = vld [vmem:[%s3 + $0xf8] sm:$0xff]
      %v1103 = vld [vmem:[%s4] sm:$0x3]
      %v1105 = vlaneseq
      %v1106 = vshrl.u32 %v1105, 7
      %v1107 = vsub.s32 0, %v1106
      %v1108 = vrot.slane %v1103, %v1107
      %v1109 = vlaneseq
      %v1110 = vshrl.u32 %v1109, 7
      %v1111 = vsub.s32 1, %v1110
      %v1112 = vrot.slane %v1103, %v1111
      %v1147 = vunpack.c.l.b16 %v1071
      %v1148 = vunpack.c.h.b16 %v1071
      %v1149 = vunpack.c.l.b16 %v1072
      %v1150 = vunpack.c.h.b16 %v1072
      %v1151 = vunpack.c.l.b16 %v1073
      %v1152 = vunpack.c.h.b16 %v1073
      %v1153 = vunpack.c.l.b16 %v1074
      %v1154 = vunpack.c.h.b16 %v1074
      %v1155 = vunpack.c.l.b16 %v1075
      %v1156 = vunpack.c.h.b16 %v1075
      %v1157 = vunpack.c.l.b16 %v1076
      %v1158 = vunpack.c.h.b16 %v1076
      %v1159 = vunpack.c.l.b16 %v1077
      %v1160 = vunpack.c.h.b16 %v1077
      %v1161 = vunpack.c.l.b16 %v1078
      %v1162 = vunpack.c.h.b16 %v1078
      %v1163 = vunpack.c.l.b16 %v1079
      %v1164 = vunpack.c.h.b16 %v1079
      %v1165 = vunpack.c.l.b16 %v1080
      %v1166 = vunpack.c.h.b16 %v1080
      %v1167 = vunpack.c.l.b16 %v1081
      %v1168 = vunpack.c.h.b16 %v1081
      %v1169 = vunpack.c.l.b16 %v1082
      %v1170 = vunpack.c.h.b16 %v1082
      %v1171 = vunpack.c.l.b16 %v1083
      %v1172 = vunpack.c.h.b16 %v1083
      %v1173 = vunpack.c.l.b16 %v1084
      %v1174 = vunpack.c.h.b16 %v1084
      %v1175 = vunpack.c.l.b16 %v1085
      %v1176 = vunpack.c.h.b16 %v1085
      %v1177 = vunpack.c.l.b16 %v1086
      %v1178 = vunpack.c.h.b16 %v1086
      %v1179 = vunpack.c.l.b16 %v1087
      %v1180 = vunpack.c.h.b16 %v1087
      %v1181 = vunpack.c.l.b16 %v1088
      %v1182 = vunpack.c.h.b16 %v1088
      %v1183 = vunpack.c.l.b16 %v1089
      %v1184 = vunpack.c.h.b16 %v1089
      %v1185 = vunpack.c.l.b16 %v1090
      %v1186 = vunpack.c.h.b16 %v1090
      %v1187 = vunpack.c.l.b16 %v1091
      %v1188 = vunpack.c.h.b16 %v1091
      %v1189 = vunpack.c.l.b16 %v1092
      %v1190 = vunpack.c.h.b16 %v1092
      %v1191 = vunpack.c.l.b16 %v1093
      %v1192 = vunpack.c.h.b16 %v1093
      %v1193 = vunpack.c.l.b16 %v1094
      %v1194 = vunpack.c.h.b16 %v1094
      %v1195 = vunpack.c.l.b16 %v1095
      %v1196 = vunpack.c.h.b16 %v1095
      %v1197 = vunpack.c.l.b16 %v1096
      %v1198 = vunpack.c.h.b16 %v1096
      %v1199 = vunpack.c.l.b16 %v1097
      %v1200 = vunpack.c.h.b16 %v1097
      %v1201 = vunpack.c.l.b16 %v1098
      %v1202 = vunpack.c.h.b16 %v1098
      %v1203 = vunpack.c.l.b16 %v1099
      %v1204 = vunpack.c.h.b16 %v1099
      %v1205 = vunpack.c.l.b16 %v1100
      %v1206 = vunpack.c.h.b16 %v1100
      %v1207 = vunpack.c.l.b16 %v1101
      %v1208 = vunpack.c.h.b16 %v1101
      %v1209 = vunpack.c.l.b16 %v1102
      %v1210 = vunpack.c.h.b16 %v1102
      %v1211 = vpack.c.b16 %v1149, %v1147
      %v1212 = vpack.c.b16 %v1150, %v1148
      %v1213 = vpack.c.b16 %v1153, %v1151
      %v1214 = vpack.c.b16 %v1154, %v1152
      %v1215 = vpack.c.b16 %v1157, %v1155
      %v1216 = vpack.c.b16 %v1158, %v1156
      %v1217 = vpack.c.b16 %v1161, %v1159
      %v1218 = vpack.c.b16 %v1162, %v1160
      %v1219 = vpack.c.b16 %v1165, %v1163
      %v1220 = vpack.c.b16 %v1166, %v1164
      %v1221 = vpack.c.b16 %v1169, %v1167
      %v1222 = vpack.c.b16 %v1170, %v1168
      %v1223 = vpack.c.b16 %v1173, %v1171
      %v1224 = vpack.c.b16 %v1174, %v1172
      %v1225 = vpack.c.b16 %v1177, %v1175
      %v1226 = vpack.c.b16 %v1178, %v1176
      %v1227 = vpack.c.b16 %v1181, %v1179
      %v1228 = vpack.c.b16 %v1182, %v1180
      %v1229 = vpack.c.b16 %v1185, %v1183
      %v1230 = vpack.c.b16 %v1186, %v1184
      %v1231 = vpack.c.b16 %v1189, %v1187
      %v1232 = vpack.c.b16 %v1190, %v1188
      %v1233 = vpack.c.b16 %v1193, %v1191
      %v1234 = vpack.c.b16 %v1194, %v1192
      %v1235 = vpack.c.b16 %v1197, %v1195
      %v1236 = vpack.c.b16 %v1198, %v1196
      %v1237 = vpack.c.b16 %v1201, %v1199
      %v1238 = vpack.c.b16 %v1202, %v1200
      %v1239 = vpack.c.b16 %v1205, %v1203
      %v1240 = vpack.c.b16 %v1206, %v1204
      %v1241 = vpack.c.b16 %v1209, %v1207
      %v1242 = vpack.c.b16 %v1210, %v1208
      %1275 = vmatprep.subr.bf16.mxu0 %v1226
      %1276 = vmatpush1.bf16.msra.mxu0 %v1225
      %1277 = vmatprep.subr.bf16.mxu0 %v1224
      %1278 = vmatpush1.bf16.msra.mxu0 %v1223
      %1279 = vmatprep.subr.bf16.mxu0 %v1222
      %1280 = vmatpush1.bf16.msra.mxu0 %v1221
      %1281 = vmatprep.subr.bf16.mxu0 %v1220
      %1282 = vmatpush1.bf16.msra.mxu0 %v1219
      %1283 = vmatprep.subr.bf16.mxu0 %v1218
      %1284 = vmatpush1.bf16.msra.mxu0 %v1217
      %1285 = vmatprep.subr.bf16.mxu0 %v1216
      %1286 = vmatpush1.bf16.msra.mxu0 %v1215
      %1287 = vmatprep.subr.bf16.mxu0 %v1214
      %1288 = vmatpush1.bf16.msra.mxu0 %v1213
      %1289 = vmatprep.subr.bf16.mxu0 %v1212
      %1290 = vmatpush1.bf16.msra.mxu0 %v1211
      %1291 = vmatprep.subr.bf16.mxu0 %v1242
      %1292 = vmatpush2.bf16.msra.mxu0 %v1241
      %1293 = vmatprep.subr.bf16.mxu0 %v1240
      %1294 = vmatpush2.bf16.msra.mxu0 %v1239
      %1295 = vmatprep.subr.bf16.mxu0 %v1238
      %1296 = vmatpush2.bf16.msra.mxu0 %v1237
      %1297 = vmatprep.subr.bf16.mxu0 %v1236
      %1298 = vmatpush2.bf16.msra.mxu0 %v1235
      %1299 = vmatprep.subr.bf16.mxu0 %v1234
      %1300 = vmatpush2.bf16.msra.mxu0 %v1233
      %1301 = vmatprep.subr.bf16.mxu0 %v1232
      %1302 = vmatpush2.bf16.msra.mxu0 %v1231
      %1303 = vmatprep.subr.bf16.mxu0 %v1230
      %1304 = vmatpush2.bf16.msra.mxu0 %v1229
      %1305 = vmatprep.subr.bf16.mxu0 %v1228
      %1306 = vmatpush2.bf16.msra.mxu0 %v1227
      %1307 = vmatprep.mubr.bf16.mxu0 %v1070
      %1308 = vmatmul.mubr.bf16.gmra.mxu0 %v1069
      %v1309 = vpop.f32.mrf.mxu0
      %v1310 = vadd.f32 %v1108, %v1309
      %v1311 = vpop.f32.mrf.mxu0
      %v1312 = vadd.f32 %v1112, %v1311
      %v1313 = vpop.f32.mrf.mxu0
      %v1314 = vadd.f32 %v1108, %v1313
      %v1315 = vpop.f32.mrf.mxu0
      %v1316 = vadd.f32 %v1112, %v1315
      %1317 = vdwg.mxu0
      %v1318 = vmax.f32 %v1310, 0.0
      %v1319 = vmax.f32 %v1312, 0.0
      %v1320 = vmax.f32 %v1314, 0.0
      %v1321 = vmax.f32 %v1316, 0.0
      %1322 = vst [vmem:[%s5] sm:$0xff] %v1318
      %1323 = vst [vmem:[%s5 + $0x8] sm:$0xff] %v1319
      %1324 = vst [vmem:[%s5 + $0x10] sm:$0xff] %v1320
      %1325 = vst [vmem:[%s5 + $0x18] sm:$0xff] %v1321
    $region33: #{_verification_call.1} parent=1 // pred_fallthru
      _
    // Predicated region
    $region34: #{_verification_call.1} parent=1 // pred_check
      _
    $region35: #{_verification_call.1} parent=1 // pred_check_branch
      %1327 = sbr.rel (0) target = $region37
    $region36: #{_verification_call.1} parent=1 // pred_region
      _
    $region37: #{_verification_call.1} parent=1 // pred_fallthru
      _
    // Predicated region
    $region38: #{_verification_call.1} parent=1 // pred_check
      _
    $region39: #{_verification_call.1} parent=1 // pred_check_branch
      %1329 = sbr.rel (0) target = $region41
    $region40: #{_verification_call.1} parent=1 // pred_region
      _
    $region41: #{_verification_call.1} parent=1 // pred_fallthru
      _
    %1330 = vsyncpa [#allocation4], 1

</llo_original>
